<compile_context>
chip_gen: v7x
topology: tpu7x:2x2x1
jax: 0.10.0
libtpu: 0.0.40
codegen_flags: <defaults>
</compile_context>

<pallas_src>
from functools import partial

import jax
import jax.numpy as jnp
from jax.experimental import pallas as pl
from jax.experimental.pallas import tpu as pltpu


def _vmem_limit_bytes():
    """Generation-aware scoped-VMEM budget (3/4 of physical, capped at 100MB)."""
    try:
        cap = int(pltpu.get_tpu_info().vmem_capacity_bytes)
    except Exception:  # pragma: no cover - conservative fallback
        cap = 64 * 1024 * 1024
    return int(min(100 * 1024 * 1024, (cap * 3) // 4))


# ---------------------------------------------------------------------------
# Kernel A: qkv = x @ w_qkv, token-major (B, N, 3C) output, scale folded into q
# grid = (B, row-tiles, 3)  -- the last axis streams W_qkv in (C, C) chunks.
# ---------------------------------------------------------------------------
def _qkv_proj_kernel(x_ref, w_ref, qkv_ref, *, scale):
    s = pl.program_id(2)                     # 0 -> q columns, 1 -> k, 2 -> v
    x = x_ref[0]                                                     # (tr, C)
    # TODO(synk): qkv_bias=False (module default); add a bias ref here if needed.
    y = jnp.dot(x, w_ref[...], preferred_element_type=jnp.float32)  # (tr, C)
    # Fold the softmax scale into q once here (free at the cast/store) so
    # Kernel B never multiplies q per step.
    mult = jnp.where(s == 0, jnp.float32(scale), jnp.float32(1.0))
    qkv_ref[0] = (y * mult).astype(qkv_ref.dtype)


def _qkv_proj(x, w_qkv, *, scale, row_tile, out_dtype):
    B, N, C = x.shape
    nr = N // row_tile
    return pl.pallas_call(
        partial(_qkv_proj_kernel, scale=scale),
        out_shape=jax.ShapeDtypeStruct((B, N, 3 * C), out_dtype),
        grid_spec=pltpu.PrefetchScalarGridSpec(
            num_scalar_prefetch=0,
            grid=(B, nr, 3),
            in_specs=[
                # x tile is resident across the 3-long column axis (one DMA).
                pl.BlockSpec((1, row_tile, C), lambda b, r, s: (b, r, 0)),
                # W_qkv streams in (C, C) chunks (smaller VMEM than (C, 3C)).
                pl.BlockSpec((C, C), lambda b, r, s: (0, s)),
            ],
            out_specs=pl.BlockSpec((1, row_tile, C), lambda b, r, s: (b, r, s)),
        ),
        compiler_params=pltpu.CompilerParams(
            dimension_semantics=("parallel", "parallel", "arbitrary"),
            vmem_limit_bytes=_vmem_limit_bytes()),
    )(x, w_qkv)


# ---------------------------------------------------------------------------
# Kernel B: flash attention (online softmax, in-kernel KV + head loops)
#           + fused concat-heads / output projection / bias.
# grid = (B, q-tiles); K/V/W_proj/bias blocks are VMEM-resident.
# ---------------------------------------------------------------------------
def _flash_attn_proj_kernel(q_ref, k_ref, v_ref, wproj_ref, bproj_ref, out_ref,
                            oall_ref, *, num_heads, head_dim, kv_chunk):
    n_kv = k_ref.shape[1]
    nkv = n_kv // kv_chunk
    tq = q_ref.shape[1]

    # Static (compile-time) loop over heads; KV loop is a fori_loop so the
    # grid stays coarse and per-step work dwarfs the ~0.35us step overhead.
    for h in range(num_heads):
        lo = h * head_dim
        hi = lo + head_dim
        q_h = q_ref[0, :, lo:hi]           # (tq, hd); softmax scale pre-folded

        def kv_step(j, carry, lo=lo, hi=hi, q_h=q_h):
            m, l, acc = carry
            start = pl.multiple_of(j * kv_chunk, kv_chunk)
            k_c = k_ref[0, pl.ds(start, kv_chunk), lo:hi]          # (ck, hd)
            v_c = v_ref[0, pl.ds(start, kv_chunk), lo:hi]          # (ck, hd)
            # q @ k^T without materializing a transposed copy (NT dot_general).
            s = jax.lax.dot_general(q_h, k_c, (((1,), (1,)), ((), ())),
                                    preferred_element_type=jnp.float32)
            m_new = jnp.maximum(m, jnp.max(s, axis=-1, keepdims=True))
            alpha = jnp.exp(m - m_new)
            p = jnp.exp(s - m_new)
            l_new = alpha * l + jnp.sum(p, axis=-1, keepdims=True)
            # Cast P to V's dtype so bf16 inputs feed the MXU in bf16; f32 acc.
            acc_new = alpha * acc + jnp.dot(p.astype(v_c.dtype), v_c,
                                            preferred_element_type=jnp.float32)
            return m_new, l_new, acc_new

        init = (jnp.full((tq, 1), -jnp.inf, dtype=jnp.float32),
                jnp.zeros((tq, 1), dtype=jnp.float32),
                jnp.zeros((tq, head_dim), dtype=jnp.float32))
        m, l, acc = jax.lax.fori_loop(0, nkv, kv_step, init)

        inv_l = pl.reciprocal(l, approx=True)      # EUP slot, ~1e-3 rel error
        oall_ref[:, lo:hi] = (acc * inv_l).astype(oall_ref.dtype)

    # Concat-heads + output projection + bias as one full-depth matmul.
    o = oall_ref[...]                                              # (tq, C)
    out = jnp.dot(o, wproj_ref[...], preferred_element_type=jnp.float32)
    out = out + bproj_ref[...].astype(jnp.float32)
    out_ref[0] = out.astype(out_ref.dtype)


def _flash_attention_proj(qkv, w_proj, b_proj2d, out_dtype, *,
                          num_heads, q_tile, kv_chunk):
    B, N, C3 = qkv.shape
    C = C3 // 3
    hd = C // num_heads
    nq = N // q_tile

    kernel = partial(_flash_attn_proj_kernel, num_heads=num_heads,
                     head_dim=hd, kv_chunk=kv_chunk)
    return pl.pallas_call(
        kernel,
        out_shape=jax.ShapeDtypeStruct((B, N, C), out_dtype),
        grid_spec=pltpu.PrefetchScalarGridSpec(
            num_scalar_prefetch=0,
            grid=(B, nq),
            in_specs=[
                # q tile: columns [0, C) of the token-major qkv array.
                pl.BlockSpec((1, q_tile, C), lambda b, qi: (b, qi, 0)),
                # Full K for batch b (columns [C, 2C)); resident across qi.
                pl.BlockSpec((1, N, C), lambda b, qi: (b, 0, 1)),
                # Full V for batch b (columns [2C, 3C)); resident across qi.
                pl.BlockSpec((1, N, C), lambda b, qi: (b, 0, 2)),
                # W_proj fully resident (constant index map -> one DMA).
                pl.BlockSpec((C, C), lambda b, qi: (0, 0)),
                pl.BlockSpec((1, C), lambda b, qi: (0, 0)),
            ],
            out_specs=pl.BlockSpec((1, q_tile, C), lambda b, qi: (b, qi, 0)),
            scratch_shapes=[
                # Concatenated per-head outputs for the fused projection.
                pltpu.VMEM((q_tile, C), w_proj.dtype),
            ],
        ),
        compiler_params=pltpu.CompilerParams(
            dimension_semantics=("parallel", "parallel"),
            vmem_limit_bytes=_vmem_limit_bytes()),
    )(qkv, qkv, qkv, w_proj, b_proj2d)


# ---------------------------------------------------------------------------
# Public wrapper
# ---------------------------------------------------------------------------
def _pick_tile(n, target):
    """Largest divisor of n that is <= target and a multiple of 8 (or n)."""
    if n <= target:
        return n
    for t in range(target, 7, -1):
        if n % t == 0 and t % 8 == 0:
            return t
    return n


def attention_pallas(x, w_qkv, w_proj, b_proj, *, num_heads,
                     q_tile=None, kv_chunk=None, row_tile=None, qkv_dtype=None):
    B, N, C = x.shape
    assert C % num_heads == 0
    assert C % 128 == 0, "lane-dense layout assumes C is a multiple of 128"
    hd = C // num_heads
    scale = hd ** (-0.5)

    q_tile = _pick_tile(N, 256) if q_tile is None else q_tile
    kv_chunk = _pick_tile(N, 256) if kv_chunk is None else kv_chunk
    row_tile = _pick_tile(N, 256) if row_tile is None else row_tile
    assert N % q_tile == 0 and N % kv_chunk == 0 and N % row_tile == 0

    # On v5e pass qkv_dtype=jnp.bfloat16 to halve the intermediate HBM traffic.
    if qkv_dtype is None:
        qkv_dtype = x.dtype

    # TODO(synk): attn_drop / proj_drop omitted (p=0.0 default => identity).
    qkv = _qkv_proj(x, w_qkv, scale=scale, row_tile=row_tile,
                    out_dtype=qkv_dtype)
    return _flash_attention_proj(
        qkv, w_proj, b_proj.reshape(1, C), x.dtype,
        num_heads=num_heads, q_tile=q_tile, kv_chunk=kv_chunk)


# ---------------------------------------------------------------------------
# Pure-JAX reference mirroring the PyTorch forward.
# ---------------------------------------------------------------------------
def attention_ref(x, w_qkv, w_proj, b_proj, *, num_heads):
    B, N, C = x.shape
    hd = C // num_heads
    scale = hd ** (-0.5)
    qkv = jnp.einsum('bnc,cd->bnd', x, w_qkv).reshape(B, N, 3, num_heads, hd)
    qkv = jnp.transpose(qkv, (2, 0, 3, 1, 4))          # (3, B, H, N, hd)
    q, k, v = qkv[0], qkv[1], qkv[2]
    attn = jnp.einsum('bhqd,bhkd->bhqk', q, k) * scale
    attn = jax.nn.softmax(attn, axis=-1)
    o = jnp.einsum('bhqk,bhkd->bhqd', attn, v)
    o = jnp.transpose(o, (0, 2, 1, 3)).reshape(B, N, C)
    return jnp.einsum('bnc,cd->bnd', o, w_proj) + b_proj


if __name__ == "__main__":
    B, N, C = 2, 64, 256
    num_heads = 4   # head_dim = 64, ViT-style

    key = jax.random.PRNGKey(0)
    kx, kqkv, kproj, kbias = jax.random.split(key, 4)

    x = jax.random.normal(kx, (B, N, C), dtype=jnp.float32)
    w_qkv = 0.02 * jax.random.normal(kqkv, (C, 3 * C), dtype=jnp.float32)
    w_proj = 0.02 * jax.random.normal(kproj, (C, C), dtype=jnp.float32)
    b_proj = 0.02 * jax.random.normal(kbias, (C,), dtype=jnp.float32)

    # Small tiles so the test exercises multiple q tiles, multiple in-kernel
    # KV chunks (online softmax), and multiple heads (fused projection).
    out = attention_pallas(x, w_qkv, w_proj, b_proj, num_heads=num_heads,
                           q_tile=32, kv_chunk=16, row_tile=32)
    out = jax.block_until_ready(out)

    ref = attention_ref(x, w_qkv, w_proj, b_proj, num_heads=num_heads)
    assert out.shape == (B, N, C)
    max_err = float(jnp.max(jnp.abs(out - ref)))
    assert jnp.allclose(out, ref, atol=2e-3, rtol=2e-3), \
        f"mismatch vs reference (max abs err {max_err})"

    print("KERNEL_OK")
</pallas_src>

<mosaic_0001>
module attributes {stable_mosaic.version = 11 : i64} {
  func.func @_qkv_proj_kernel(%arg0: i32, %arg1: i32, %arg2: i32, %arg3: memref<1x32x256xf32, #tpu.memory_space<vmem>>, %arg4: memref<256x256xf32, #tpu.memory_space<vmem>>, %arg5: memref<1x32x256xf32, #tpu.memory_space<vmem>>) attributes {dimension_semantics = [#tpu.dimension_semantics<parallel>, #tpu.dimension_semantics<parallel>, #tpu.dimension_semantics<arbitrary>], iteration_bounds = array<i64: 2, 2, 3>, scalar_prefetch = 0 : i64, scratch_operands = 0 : i64, tpu.core_type = #tpu.core_type<tc>, window_params = [{transform_indices = @transform_0, window_bounds = array<i64: 1, 32, 256>}, {transform_indices = @transform_1, window_bounds = array<i64: 256, 256>}, {transform_indices = @transform_2, window_bounds = array<i64: 1, 32, 256>}]} {
    %c0 = arith.constant 0 : index
    %c0_0 = arith.constant 0 : index
    %c0_1 = arith.constant 0 : index
    %0 = vector.load %arg3[%c0, %c0_0, %c0_1] : memref<1x32x256xf32, #tpu.memory_space<vmem>>, vector<1x32x256xf32>
    %1 = vector.shape_cast %0 : vector<1x32x256xf32> to vector<32x256xf32>
    %c0_2 = arith.constant 0 : index
    %c0_3 = arith.constant 0 : index
    %2 = vector.load %arg4[%c0_2, %c0_3] : memref<256x256xf32, #tpu.memory_space<vmem>>, vector<256x256xf32>
    %cst = arith.constant dense<0.000000e+00> : vector<32x256xf32>
    %3 = tpu.matmul %1, %2, %cst {dimension_numbers = #tpu.dot_dimension_numbers<[1], [0], [0], [1], [0, 0, 1, 1], [], []>} : vector<32x256xf32>, vector<256x256xf32>, vector<32x256xf32> -> vector<32x256xf32>
    %c0_i32 = arith.constant 0 : i32
    %4 = arith.cmpi eq, %arg2, %c0_i32 : i32
    %cst_4 = arith.constant 1.250000e-01 : f32
    %cst_5 = arith.constant 1.000000e+00 : f32
    %5 = arith.select %4, %cst_4, %cst_5 : f32
    %6 = vector.broadcast %5 : f32 to vector<32x256xf32>
    %7 = arith.mulf %3, %6 : vector<32x256xf32>
    %c0_6 = arith.constant 0 : index
    %c0_7 = arith.constant 0 : index
    %c0_8 = arith.constant 0 : index
    %8 = vector.load %arg5[%c0_6, %c0_7, %c0_8] : memref<1x32x256xf32, #tpu.memory_space<vmem>>, vector<1x32x256xf32>
    %9 = vector.shape_cast %8 : vector<1x32x256xf32> to vector<32x256xf32>
    %10 = vector.shape_cast %7 : vector<32x256xf32> to vector<1x32x256xf32>
    tpu.vector_store %arg5[%c0_6, %c0_7, %c0_8], %10 {strides = array<i32>} : memref<1x32x256xf32, #tpu.memory_space<vmem>>, vector<1x32x256xf32>,
    return
  }
  func.func @transform_0(%arg0: i32, %arg1: i32, %arg2: i32) -> (i32, i32, i32) {
    %c0_i32 = arith.constant 0 : i32
    %c0_i32_0 = arith.constant 0 : i32
    return %arg0, %arg1, %c0_i32 : i32, i32, i32
  }
  func.func @transform_1(%arg0: i32, %arg1: i32, %arg2: i32) -> (i32, i32) {
    %c0_i32 = arith.constant 0 : i32
    %c0_i32_0 = arith.constant 0 : i32
    return %c0_i32, %arg2 : i32, i32
  }
  func.func @transform_2(%arg0: i32, %arg1: i32, %arg2: i32) -> (i32, i32, i32) {
    %c0_i32 = arith.constant 0 : i32
    return %arg0, %arg1, %arg2 : i32, i32, i32
  }
}

</mosaic_0001>

<llo_original>
// kernel: tpu_custom_call.1
$region0: #{tpu_custom_call.1}
  #allocation0 [shape = 'u32[]', space=smem, size = 0x4, offset = 0x4, fixed_abs, tag = 'smem constant byte address 0x4 - core index']
  #allocation1 [shape = 'u32[144,128]{1,0:T(1,128)}', space=vmem, size = 0x12000, scoped, tag = 'internal scratch']
  %s0 = inlined_call_operand.hbm [shape: f32[2,64,256], index: 0, kind: input, shape index: {}]
  %s1 = inlined_call_operand.hbm [shape: f32[256,768], index: 1, kind: input, shape index: {}]
  %s2 = inlined_call_operand.hbm [shape: f32[2,64,768], index: 2, kind: output, shape index: {}]
  %s3 = sld [smem:[#allocation0]]
  $region49: #{tpu_custom_call.1} parent=0
    _
  %s5 = ssub.s32 1, %s3
  %s6 = scalar_select 0, %s5, %s3
  $region1: #{tpu_custom_call.1} parent=0
    #allocation2 [shape = 'u8[65536]{0}', space=vmem, size = 0x10000, scoped, tag = 'input window, operand 0']
    #allocation3 [shape = 's32[2]{0}', space=sflag, size = 0x8, scoped, tag = 'scoped memory for tpu_custom_call.1']
    #allocation4 [shape = 's32[2]{0}', space=sflag, size = 0x8, scoped, tag = 'scoped memory for tpu_custom_call.1']
    #allocation5 [shape = 'u8[524288]{0}', space=vmem, size = 0x80000, scoped, tag = 'input window, operand 1']
    #allocation6 [shape = 's32[2]{0}', space=sflag, size = 0x8, scoped, tag = 'scoped memory for tpu_custom_call.1']
    #allocation7 [shape = 'u8[65536]{0}', space=vmem, size = 0x10000, scoped, tag = 'output window, operand 0']
    %7 = vsyncpa [#allocation3], 0
    %s8 = scalar_lea.sflag [#allocation3], 1
    %9 = vsyncpa %s8, 0
    %10 = vsyncpa [#allocation6], 0
    %s11 = scalar_lea.sflag [#allocation6], 1
    %12 = vsyncpa %s11, 0
    %13 = vsyncpa [#allocation4], 0
    %s14 = scalar_lea.sflag [#allocation4], 1
    %15 = vsyncpa %s14, 0
    loop: start=0, step=1, limit=14
    $region2: #{tpu_custom_call.1} parent=1 // loop_pre_header
      _
    $region3: #{tpu_custom_call.1} parent=1 // loop_header
      %s17 = sphi 0, %s21
      %p18 = scmp.ge.s32.totalorder %s17, 14
      %s24 = sphi 0, %s43
      %s25 = sphi 0, %s39
      %s26 = sphi 0, %s35
      %s27 = sphi 0, %s24
      %s28 = sphi 0, %s25
      %s29 = sphi 0, %s26
      %s30 = sphi 0, %s27
      %s31 = sphi 0, %s28
      %s32 = sphi 0, %s29
      %s48 = sphi 0, %s50
      %s51 = sphi 0, %s48
      %s52 = sphi 0, %s51
      %s68 = sphi 0, %s52
      %s74 = sphi 0, %s76
      %s77 = sphi 0, %s74
      %s78 = sphi 0, %s77
      %s94 = sphi 0, %s78
      %s104 = sphi 0, %s106
      %s107 = sphi 0, %s104
      %s108 = sphi 0, %s107
      %s124 = sphi 0, %s108
    $region4: #{tpu_custom_call.1} parent=1 // loop_header_branch
      %20 = sbr.rel (%p18) target = $region8
    $region5: #{tpu_custom_call.1} parent=1 // loop_body
      %s22 = ssub.s32 %s17, 1
      %s23 = ssub.s32 %s17, 2
      %s33 = sadd.s32 1, %s26
      %p34 = scmp.ge.s32.totalorder %s33, 3
      %s35 = scalar_select %p34, 0, %s33
      %s36 = sadd.s32 1, %s25
      %s37 = scalar_select %p34, %s36, %s25
      %p38 = scmp.ge.s32.totalorder %s37, 2
      %s39 = scalar_select %p38, 0, %s37
      %s40 = sadd.s32 1, %s24
      %s41 = scalar_select %p38, %s40, %s24
      %p42 = scmp.ge.s32.totalorder %s41, 2
      %s43 = scalar_select %p42, 0, %s41
      %s44 = ssub.s32 %s24, %s43
      %s45 = ssub.s32 %s25, %s39
      %s46 = sor.u32 %s44, %s45
      %p47 = scmp.eq.s32.totalorder %s46, 0
      %s49 = sadd.s32 %s48, 1
      %s50 = scalar_select %p47, %s48, %s49
      %p53 = pneg %p47
      %p54 = scmp.eq.s32.totalorder %s17, 11
      %p55 = por %p53, %p54
      %p56 = scmp.ne.s32.totalorder %s48, %s51
      %p57 = scmp.eq.s32.totalorder %s17, 0
      %p58 = por %p56, %p57
      %p59 = scmp.ne.s32.totalorder %s48, %s51
      %p60 = scmp.eq.s32.totalorder %s22, 11
      %p61 = por %p59, %p60
      %p62 = scmp.ne.s32.totalorder %s51, %s52
      %p63 = scmp.eq.s32.totalorder %s22, 0
      %p64 = por %p62, %p63
      %p65 = scmp.ne.s32.totalorder %s51, %s52
      %p66 = scmp.eq.s32.totalorder %s23, 11
      %p67 = por %p65, %p66
      %p69 = scmp.ne.s32.totalorder %s52, %s68
      %p70 = scmp.eq.s32.totalorder %s23, 0
      %p71 = por %p69, %p70
      %s72 = ssub.s32 %s26, %s35
      %p73 = scmp.eq.s32.totalorder %s72, 0
      %s75 = sadd.s32 %s74, 1
      %s76 = scalar_select %p73, %s74, %s75
      %p79 = pneg %p73
      %p80 = scmp.eq.s32.totalorder %s17, 11
      %p81 = por %p79, %p80
      %p82 = scmp.ne.s32.totalorder %s74, %s77
      %p83 = scmp.eq.s32.totalorder %s17, 0
      %p84 = por %p82, %p83
      %p85 = scmp.ne.s32.totalorder %s74, %s77
      %p86 = scmp.eq.s32.totalorder %s22, 11
      %p87 = por %p85, %p86
      %p88 = scmp.ne.s32.totalorder %s77, %s78
      %p89 = scmp.eq.s32.totalorder %s22, 0
      %p90 = por %p88, %p89
      %p91 = scmp.ne.s32.totalorder %s77, %s78
      %p92 = scmp.eq.s32.totalorder %s23, 11
      %p93 = por %p91, %p92
      %p95 = scmp.ne.s32.totalorder %s78, %s94
      %p96 = scmp.eq.s32.totalorder %s23, 0
      %p97 = por %p95, %p96
      %s98 = ssub.s32 %s24, %s43
      %s99 = ssub.s32 %s25, %s39
      %s100 = sor.u32 %s98, %s99
      %s101 = ssub.s32 %s26, %s35
      %s102 = sor.u32 %s100, %s101
      %p103 = scmp.eq.s32.totalorder %s102, 0
      %s105 = sadd.s32 %s104, 1
      %s106 = scalar_select %p103, %s104, %s105
      %p109 = pneg %p103
      %p110 = scmp.eq.s32.totalorder %s17, 11
      %p111 = por %p109, %p110
      %p112 = scmp.ne.s32.totalorder %s104, %s107
      %p113 = scmp.eq.s32.totalorder %s17, 0
      %p114 = por %p112, %p113
      %p115 = scmp.ne.s32.totalorder %s104, %s107
      %p116 = scmp.eq.s32.totalorder %s22, 11
      %p117 = por %p115, %p116
      %p118 = scmp.ne.s32.totalorder %s107, %s108
      %p119 = scmp.eq.s32.totalorder %s22, 0
      %p120 = por %p118, %p119
      %p121 = scmp.ne.s32.totalorder %s107, %s108
      %p122 = scmp.eq.s32.totalorder %s23, 11
      %p123 = por %p121, %p122
      %p125 = scmp.ne.s32.totalorder %s108, %s124
      %p126 = scmp.eq.s32.totalorder %s23, 0
      %p127 = por %p125, %p126
      %p128 = scmp.le.s32.totalorder 1, %s17
      %p129 = scmp.lt.s32.totalorder %s17, 13
      %p130 = pnand %p128, %p129
      %p131 = pneg %p130
      // Predicated region
      $region9: #{tpu_custom_call.1} parent=5 // pred_check
        _
      $region10: #{tpu_custom_call.1} parent=5 // pred_check_branch
        %133 = sbr.rel (%p130) target = $region12
      $region11: #{tpu_custom_call.1} parent=5 // pred_region
        %s134 = ssub.s32 %s17, 1
      $region12: #{tpu_custom_call.1} parent=5 // pred_fallthru
        _
      %p135 = scmp.lt.s32.totalorder %s17, 12
      // Predicated region
      $region13: #{tpu_custom_call.1} parent=5 // pred_check
        %p136 = pneg %p135
      $region14: #{tpu_custom_call.1} parent=5 // pred_check_branch
        %138 = sbr.rel (%p136) target = $region16
      $region15: #{tpu_custom_call.1} parent=5 // pred_region
        // Predicated region
        $region17: #{tpu_custom_call.1} parent=15 // pred_check
          %p139 = pneg %p58
        $region18: #{tpu_custom_call.1} parent=15 // pred_check_branch
          %141 = sbr.rel (%p139) target = $region20
        $region19: #{tpu_custom_call.1} parent=15 // pred_region
          %s142 = sand.u32 %s48, 1
          %s143 = scalar_lea.sflag [#allocation3], %s142
          %s144 = sand.u32 %s48, 1
          %s145 = smul.addr %s144, 64
          %s146 = scalar_lea.vmem [#allocation2], %s145
          %s147 = smul.u32 4, %s25
          %s149 = ssub.s32 1024, 1024
          %150 = vsyncadd %s143, %s149
          %s151 = smul.addr %s147, 2
          %s152 = smul.addr %s24, 16
          %s153 = sadd.s32 %s151, %s152
          %s154 = smul.addr %s153, 128
          %s155 = scalar_lea.hbm %s0, %s154
          %s156 = sshll.u32 %s146, 4
          %s157 = int_to_ptr.vmem [resolvable:$true] %s156
          %162 = dma.hbm_to_vmem [thread:$0]  %s155, 1024, %s157, %s143, 256, 256, 16
        $region20: #{tpu_custom_call.1} parent=15 // pred_fallthru
          _
        // Predicated region
        $region21: #{tpu_custom_call.1} parent=15 // pred_check
          %p163 = pneg %p84
        $region22: #{tpu_custom_call.1} parent=15 // pred_check_branch
          %165 = sbr.rel (%p163) target = $region24
        $region23: #{tpu_custom_call.1} parent=15 // pred_region
          %s166 = sand.u32 %s74, 1
          %s167 = scalar_lea.sflag [#allocation6], %s166
          %s168 = sand.u32 %s74, 1
          %s169 = smul.addr %s168, 512
          %s170 = scalar_lea.vmem [#allocation5], %s169
          %s171 = smul.u32 2, %s26
          %s173 = ssub.s32 8192, 8192
          %174 = vsyncadd %s167, %s173
          %s175 = smul.addr %s171, 128
          %s176 = scalar_lea.hbm %s1, %s175
          %s177 = sshll.u32 %s170, 4
          %s178 = int_to_ptr.vmem [resolvable:$true] %s177
          %183 = dma.hbm_to_vmem [thread:$0]  %s176, 8192, %s178, %s167, 768, 256, 16
        $region24: #{tpu_custom_call.1} parent=15 // pred_fallthru
          _
      $region16: #{tpu_custom_call.1} parent=5 // pred_fallthru
        _
      %p184 = scmp.le.s32.totalorder 1, %s17
      %p185 = scmp.lt.s32.totalorder %s17, 13
      %p186 = pnand %p184, %p185
      %p187 = pneg %p186
      // Predicated region
      $region25: #{tpu_custom_call.1} parent=5 // pred_check
        _
      $region26: #{tpu_custom_call.1} parent=5 // pred_check_branch
        %189 = sbr.rel (%p186) target = $region28
      $region27: #{tpu_custom_call.1} parent=5 // pred_region
        %s190 = ssub.s32 %s17, 1
        %s191 = sand.u32 %s51, 1
        %s192 = scalar_lea.sflag [#allocation3], %s191
        %s193 = sand.u32 %s51, 1
        %s194 = smul.addr %s193, 64
        %s195 = scalar_lea.vmem [#allocation2], %s194
        // Predicated region
        $region29: #{tpu_custom_call.1} parent=27 // pred_check
          %p196 = pneg %p64
        $region30: #{tpu_custom_call.1} parent=27 // pred_check_branch
          %198 = sbr.rel (%p196) target = $region32
        $region31: #{tpu_custom_call.1} parent=27 // pred_region
          %199 = dma.done %s192, 1024
        $region32: #{tpu_custom_call.1} parent=27 // pred_fallthru
          _
        %s200 = sand.u32 %s77, 1
        %s201 = scalar_lea.sflag [#allocation6], %s200
        %s202 = sand.u32 %s77, 1
        %s203 = smul.addr %s202, 512
        %s204 = scalar_lea.vmem [#allocation5], %s203
        // Predicated region
        $region33: #{tpu_custom_call.1} parent=27 // pred_check
          %p205 = pneg %p90
        $region34: #{tpu_custom_call.1} parent=27 // pred_check_branch
          %207 = sbr.rel (%p205) target = $region36
        $region35: #{tpu_custom_call.1} parent=27 // pred_region
          %208 = dma.done %s201, 8192
        $region36: #{tpu_custom_call.1} parent=27 // pred_fallthru
          _
        %s209 = sand.u32 %s51, 1
        %s210 = scalar_lea.sflag [#allocation3], %s209
        %s211 = sand.u32 %s51, 1
        %s212 = smul.addr %s211, 64
        %s213 = scalar_lea.vmem [#allocation2], %s212
        %p214 = pneg %p64
        %p215 = pneg %p61
        %s216 = sand.u32 %s77, 1
        %s217 = scalar_lea.sflag [#allocation6], %s216
        %s218 = sand.u32 %s77, 1
        %s219 = smul.addr %s218, 512
        %s220 = scalar_lea.vmem [#allocation5], %s219
        %p221 = pneg %p90
        %p222 = pneg %p87
        %p223 = pneg %p120
        %p224 = pneg %p117
        %s225 = sand.u32 %s107, 1
        %s226 = scalar_lea.sflag [#allocation4], %s225
        %s227 = sand.u32 %s107, 1
        %s228 = smul.addr %s227, 64
        %s229 = scalar_lea.vmem [#allocation7], %s228
        %s230 = smul.u32 4, %s28
        %s231 = smul.u32 2, %s29
        %s232 = smul.u32 4, %s28
        %s233 = smul.u32 2, %s29
        %v234 = vld [vmem:[%s195] sm:$0xff]
        %v235 = vld [vmem:[%s195 + $0x8] sm:$0xff]
        %v236 = vld [vmem:[%s195 + $0x10] sm:$0xff]
        %v237 = vld [vmem:[%s195 + $0x18] sm:$0xff]
        %v238 = vld [vmem:[%s195 + $0x20] sm:$0xff]
        %v239 = vld [vmem:[%s195 + $0x28] sm:$0xff]
        %v240 = vld [vmem:[%s195 + $0x30] sm:$0xff]
        %v241 = vld [vmem:[%s195 + $0x38] sm:$0xff]
        %v242 = vld [vmem:[%s204] sm:$0xff]
        %v243 = vld [vmem:[%s204 + $0x8] sm:$0xff]
        %v244 = vld [vmem:[%s204 + $0x10] sm:$0xff]
        %v245 = vld [vmem:[%s204 + $0x18] sm:$0xff]
        %v246 = vld [vmem:[%s204 + $0x20] sm:$0xff]
        %v247 = vld [vmem:[%s204 + $0x28] sm:$0xff]
        %v248 = vld [vmem:[%s204 + $0x30] sm:$0xff]
        %v249 = vld [vmem:[%s204 + $0x38] sm:$0xff]
        %v250 = vld [vmem:[%s204 + $0x40] sm:$0xff]
        %v251 = vld [vmem:[%s204 + $0x48] sm:$0xff]
        %v252 = vld [vmem:[%s204 + $0x50] sm:$0xff]
        %v253 = vld [vmem:[%s204 + $0x58] sm:$0xff]
        %v254 = vld [vmem:[%s204 + $0x60] sm:$0xff]
        %v255 = vld [vmem:[%s204 + $0x68] sm:$0xff]
        %v256 = vld [vmem:[%s204 + $0x70] sm:$0xff]
        %v257 = vld [vmem:[%s204 + $0x78] sm:$0xff]
        %v258 = vld [vmem:[%s204 + $0x80] sm:$0xff]
        %v259 = vld [vmem:[%s204 + $0x88] sm:$0xff]
        %v260 = vld [vmem:[%s204 + $0x90] sm:$0xff]
        %v261 = vld [vmem:[%s204 + $0x98] sm:$0xff]
        %v262 = vld [vmem:[%s204 + $0xa0] sm:$0xff]
        %v263 = vld [vmem:[%s204 + $0xa8] sm:$0xff]
        %v264 = vld [vmem:[%s204 + $0xb0] sm:$0xff]
        %v265 = vld [vmem:[%s204 + $0xb8] sm:$0xff]
        %v266 = vld [vmem:[%s204 + $0xc0] sm:$0xff]
        %v267 = vld [vmem:[%s204 + $0xc8] sm:$0xff]
        %v268 = vld [vmem:[%s204 + $0xd0] sm:$0xff]
        %v269 = vld [vmem:[%s204 + $0xd8] sm:$0xff]
        %v270 = vld [vmem:[%s204 + $0xe0] sm:$0xff]
        %v271 = vld [vmem:[%s204 + $0xe8] sm:$0xff]
        %v272 = vld [vmem:[%s204 + $0xf0] sm:$0xff]
        %v273 = vld [vmem:[%s204 + $0xf8] sm:$0xff]
        %v274 = vld [vmem:[%s204 + $0x100] sm:$0xff]
        %v275 = vld [vmem:[%s204 + $0x108] sm:$0xff]
        %v276 = vld [vmem:[%s204 + $0x110] sm:$0xff]
        %v277 = vld [vmem:[%s204 + $0x118] sm:$0xff]
        %v278 = vld [vmem:[%s204 + $0x120] sm:$0xff]
        %v279 = vld [vmem:[%s204 + $0x128] sm:$0xff]
        %v280 = vld [vmem:[%s204 + $0x130] sm:$0xff]
        %v281 = vld [vmem:[%s204 + $0x138] sm:$0xff]
        %v282 = vld [vmem:[%s204 + $0x140] sm:$0xff]
        %v283 = vld [vmem:[%s204 + $0x148] sm:$0xff]
        %v284 = vld [vmem:[%s204 + $0x150] sm:$0xff]
        %v285 = vld [vmem:[%s204 + $0x158] sm:$0xff]
        %v286 = vld [vmem:[%s204 + $0x160] sm:$0xff]
        %v287 = vld [vmem:[%s204 + $0x168] sm:$0xff]
        %v288 = vld [vmem:[%s204 + $0x170] sm:$0xff]
        %v289 = vld [vmem:[%s204 + $0x178] sm:$0xff]
        %v290 = vld [vmem:[%s204 + $0x180] sm:$0xff]
        %v291 = vld [vmem:[%s204 + $0x188] sm:$0xff]
        %v292 = vld [vmem:[%s204 + $0x190] sm:$0xff]
        %v293 = vld [vmem:[%s204 + $0x198] sm:$0xff]
        %v294 = vld [vmem:[%s204 + $0x1a0] sm:$0xff]
        %v295 = vld [vmem:[%s204 + $0x1a8] sm:$0xff]
        %v296 = vld [vmem:[%s204 + $0x1b0] sm:$0xff]
        %v297 = vld [vmem:[%s204 + $0x1b8] sm:$0xff]
        %v298 = vld [vmem:[%s204 + $0x1c0] sm:$0xff]
        %v299 = vld [vmem:[%s204 + $0x1c8] sm:$0xff]
        %v300 = vld [vmem:[%s204 + $0x1d0] sm:$0xff]
        %v301 = vld [vmem:[%s204 + $0x1d8] sm:$0xff]
        %v302 = vld [vmem:[%s204 + $0x1e0] sm:$0xff]
        %v303 = vld [vmem:[%s204 + $0x1e8] sm:$0xff]
        %v304 = vld [vmem:[%s204 + $0x1f0] sm:$0xff]
        %v305 = vld [vmem:[%s204 + $0x1f8] sm:$0xff]
        %306 = vmatprep.subr.mxu0 %v243
        %307 = vmatpush1.msra.mxu0 %v242
        %308 = vmatprep.subr.mxu0 %v245
        %309 = vmatpush1.msra.mxu0 %v244
        %310 = vmatprep.subr.mxu0 %v247
        %311 = vmatpush1.msra.mxu0 %v246
        %312 = vmatprep.subr.mxu0 %v249
        %313 = vmatpush1.msra.mxu0 %v248
        %314 = vmatprep.subr.mxu0 %v251
        %315 = vmatpush1.msra.mxu0 %v250
        %316 = vmatprep.subr.mxu0 %v253
        %317 = vmatpush1.msra.mxu0 %v252
        %318 = vmatprep.subr.mxu0 %v255
        %319 = vmatpush1.msra.mxu0 %v254
        %320 = vmatprep.subr.mxu0 %v257
        %321 = vmatpush1.msra.mxu0 %v256
        %322 = vmatprep.subr.mxu0 %v259
        %323 = vmatpush1.msra.mxu0 %v258
        %324 = vmatprep.subr.mxu0 %v261
        %325 = vmatpush1.msra.mxu0 %v260
        %326 = vmatprep.subr.mxu0 %v263
        %327 = vmatpush1.msra.mxu0 %v262
        %328 = vmatprep.subr.mxu0 %v265
        %329 = vmatpush1.msra.mxu0 %v264
        %330 = vmatprep.subr.mxu0 %v267
        %331 = vmatpush1.msra.mxu0 %v266
        %332 = vmatprep.subr.mxu0 %v269
        %333 = vmatpush1.msra.mxu0 %v268
        %334 = vmatprep.subr.mxu0 %v271
        %335 = vmatpush1.msra.mxu0 %v270
        %336 = vmatprep.subr.mxu0 %v273
        %337 = vmatpush1.msra.mxu0 %v272
        %338 = vmatprep.subr.mxu0 %v275
        %339 = vmatpush1.msra.mxu0 %v274
        %340 = vmatprep.subr.mxu0 %v277
        %341 = vmatpush1.msra.mxu0 %v276
        %342 = vmatprep.subr.mxu0 %v279
        %343 = vmatpush1.msra.mxu0 %v278
        %344 = vmatprep.subr.mxu0 %v281
        %345 = vmatpush1.msra.mxu0 %v280
        %346 = vmatprep.subr.mxu0 %v283
        %347 = vmatpush1.msra.mxu0 %v282
        %348 = vmatprep.subr.mxu0 %v285
        %349 = vmatpush1.msra.mxu0 %v284
        %350 = vmatprep.subr.mxu0 %v287
        %351 = vmatpush1.msra.mxu0 %v286
        %352 = vmatprep.subr.mxu0 %v289
        %353 = vmatpush1.msra.mxu0 %v288
        %354 = vmatprep.subr.mxu0 %v291
        %355 = vmatpush1.msra.mxu0 %v290
        %356 = vmatprep.subr.mxu0 %v293
        %357 = vmatpush1.msra.mxu0 %v292
        %358 = vmatprep.subr.mxu0 %v295
        %359 = vmatpush1.msra.mxu0 %v294
        %360 = vmatprep.subr.mxu0 %v297
        %361 = vmatpush1.msra.mxu0 %v296
        %362 = vmatprep.subr.mxu0 %v299
        %363 = vmatpush1.msra.mxu0 %v298
        %364 = vmatprep.subr.mxu0 %v301
        %365 = vmatpush1.msra.mxu0 %v300
        %366 = vmatprep.subr.mxu0 %v303
        %367 = vmatpush1.msra.mxu0 %v302
        %368 = vmatprep.subr.mxu0 %v305
        %369 = vmatpush1.msra.mxu0 %v304
        %370 = vmatprep.mubr.f32.mxu0 %v235
        %371 = vmatmul.mubr.f32.gmra.mrb[0].mxu0 %v234
        %v372 = vpop.f32.mrb[0].mxu0
        %v373 = vadd.f32 0.0, %v372
        %v374 = vpop.f32.mrb[0].mxu0
        %v375 = vadd.f32 0.0, %v374
        %376 = vmatprep.mubr.f32.mxu0 %v237
        %377 = vmatmul.mubr.f32.gmra.mrb[0].mxu0 %v236
        %v378 = vpop.f32.mrb[0].mxu0
        %v379 = vadd.f32 0.0, %v378
        %v380 = vpop.f32.mrb[0].mxu0
        %v381 = vadd.f32 0.0, %v380
        %382 = vmatprep.mubr.f32.mxu0 %v239
        %383 = vmatmul.mubr.f32.gmra.mrb[0].mxu0 %v238
        %v384 = vpop.f32.mrb[0].mxu0
        %v385 = vadd.f32 0.0, %v384
        %v386 = vpop.f32.mrb[0].mxu0
        %v387 = vadd.f32 0.0, %v386
        %388 = vmatprep.mubr.f32.mxu0 %v241
        %389 = vmatmul.mubr.f32.gmra.mrb[0].mxu0 %v240
        %v390 = vpop.f32.mrb[0].mxu0
        %v391 = vadd.f32 0.0, %v390
        %v392 = vpop.f32.mrb[0].mxu0
        %v393 = vadd.f32 0.0, %v392
        %394 = vdwg.mxu0
        %p395 = scmp.eq.s32.totalorder %s29, 0
        %s396 = scalar_select %p395, 0.125, 1.0
        %v397 = vstv %s396
        %v398 = vmul.f32 %v373, %v397
        %v399 = vmul.f32 %v375, %v397
        %v400 = vmul.f32 %v379, %v397
        %v401 = vmul.f32 %v381, %v397
        %v402 = vmul.f32 %v385, %v397
        %v403 = vmul.f32 %v387, %v397
        %v404 = vmul.f32 %v391, %v397
        %v405 = vmul.f32 %v393, %v397
        %406 = vst [vmem:[%s229] sm:$0xff] %v398
        %407 = vst [vmem:[%s229 + $0x8] sm:$0xff] %v399
        %408 = vst [vmem:[%s229 + $0x10] sm:$0xff] %v400
        %409 = vst [vmem:[%s229 + $0x18] sm:$0xff] %v401
        %410 = vst [vmem:[%s229 + $0x20] sm:$0xff] %v402
        %411 = vst [vmem:[%s229 + $0x28] sm:$0xff] %v403
        %412 = vst [vmem:[%s229 + $0x30] sm:$0xff] %v404
        %413 = vst [vmem:[%s229 + $0x38] sm:$0xff] %v405
        %s414 = sand.u32 %s107, 1
        %s415 = scalar_lea.sflag [#allocation4], %s414
        %s416 = sand.u32 %s107, 1
        %s417 = smul.addr %s416, 64
        %s418 = scalar_lea.vmem [#allocation7], %s417
        // Predicated region
        $region37: #{tpu_custom_call.1} parent=27 // pred_check
          %p419 = pneg %p117
        $region38: #{tpu_custom_call.1} parent=27 // pred_check_branch
          %421 = sbr.rel (%p419) target = $region40
        $region39: #{tpu_custom_call.1} parent=27 // pred_region
          %s422 = smul.u32 4, %s28
          %s423 = smul.u32 2, %s29
          %s425 = ssub.s32 1024, 1024
          %426 = vsyncadd %s415, %s425
          %s427 = smul.addr %s422, 6
          %s428 = sadd.s32 %s423, %s427
          %s429 = smul.addr %s27, 48
          %s430 = sadd.s32 %s428, %s429
          %s431 = smul.addr %s430, 128
          %s432 = scalar_lea.hbm %s2, %s431
          %s433 = sshll.u32 %s418, 4
          %s434 = int_to_ptr.vmem [resolvable:$true] %s433
          %439 = dma.vmem_to_hbm [thread:$0]  %s434, 1024, %s432, %s415, 256, 768, 16
        $region40: #{tpu_custom_call.1} parent=27 // pred_fallthru
          _
      $region28: #{tpu_custom_call.1} parent=5 // pred_fallthru
        _
      %p440 = scmp.le.s32.totalorder 2, %s17
      // Predicated region
      $region41: #{tpu_custom_call.1} parent=5 // pred_check
        %p441 = pneg %p440
      $region42: #{tpu_custom_call.1} parent=5 // pred_check_branch
        %443 = sbr.rel (%p441) target = $region44
      $region43: #{tpu_custom_call.1} parent=5 // pred_region
        %s444 = ssub.s32 %s17, 2
        // Predicated region
        $region45: #{tpu_custom_call.1} parent=43 // pred_check
          %p445 = pneg %p123
        $region46: #{tpu_custom_call.1} parent=43 // pred_check_branch
          %447 = sbr.rel (%p445) target = $region48
        $region47: #{tpu_custom_call.1} parent=43 // pred_region
          %s448 = sand.u32 %s108, 1
          %s449 = scalar_lea.sflag [#allocation4], %s448
          %s450 = sand.u32 %s108, 1
          %s451 = smul.addr %s450, 64
          %s452 = scalar_lea.vmem [#allocation7], %s451
          %453 = dma.done %s449, 1024
        $region48: #{tpu_custom_call.1} parent=43 // pred_fallthru
          _
      $region44: #{tpu_custom_call.1} parent=5 // pred_fallthru
        _
    $region6: #{tpu_custom_call.1} parent=1 // loop_footer
      %s21 = sadd.s32 1, %s17
    $region7: #{tpu_custom_call.1} parent=1 // loop_footer_branch
      %16 = sbr.rel target = $region3
    $region8: #{tpu_custom_call.1} parent=1 // loop_exit
      _
    %454 = vsyncpa [#allocation3], 1
    %s455 = scalar_lea.sflag [#allocation3], 1
    %456 = vsyncpa %s455, 1
    %457 = vsyncpa [#allocation6], 1
    %s458 = scalar_lea.sflag [#allocation6], 1
    %459 = vsyncpa %s458, 1
    %460 = vsyncpa [#allocation4], 1
    %s461 = scalar_lea.sflag [#allocation4], 1
    %462 = vsyncpa %s461, 1

</llo_original>
